<compile_context>
chip_gen: v7x
topology: tpu7x:2x2x1
jax: 0.10.0
libtpu: 0.0.40
codegen_flags: <defaults>
</compile_context>

<pallas_src>
import functools

import jax
import jax.numpy as jnp
from jax.experimental import pallas as pl
from jax.experimental.pallas import tpu as pltpu


# ----------------------------------------------------------------------------
# Fused kernel: whole MACC forward for one batch of rows.
# ----------------------------------------------------------------------------
def _macc_fused_kernel(obs_ref, h_ref, c_ref,
                       w_gate_x_ref, w_gate_h_ref, b_gate_ref,
                       w_cb1_ref, b_cb1_ref, w_cb2_ref, b_cb2_ref,
                       e_fused_ref, b_lce_ref,
                       w_out_h_ref, w_out_c_ref, b_out_ref,
                       out_ref,
                       *, hid, head_sizes, out_cols):
    f32 = jnp.float32
    obs = obs_ref[...]
    h_prev = h_ref[...]
    c_prev = c_ref[...]
    rows = obs.shape[0]

    # --- consensus-builder student on previous hidden state -----------------
    # TODO(synk): when info['alive_mask'] exists, multiply h_prev (and the
    #             resulting comm) by the agent mask; dropped here because the
    #             mask is all-ones in this code path.
    cb_h = jnp.maximum(
        jnp.dot(h_prev, w_cb1_ref[...], preferred_element_type=f32)
        + b_cb1_ref[...], 0.0)
    proj = (jnp.dot(cb_h, w_cb2_ref[...], preferred_element_type=f32)
            + b_cb2_ref[...])

    # softmax(proj, -1).max(-1)[1] == argmax(proj, -1)  (softmax is monotone)
    row_max = jnp.max(proj, axis=-1, keepdims=True)
    col_iota = jax.lax.broadcasted_iota(jnp.int32, proj.shape, 1)
    big = jnp.int32(proj.shape[-1] + 1)
    idx = jnp.min(jnp.where(proj >= row_max, col_iota, big),
                  axis=-1, keepdims=True)           # first max index, (N, 1)

    # embedding lookup + latent_consensus_encoder folded into one matmul:
    # onehot @ (emb_table @ W_lce.T) + b_lce
    n_rows = e_fused_ref.shape[0]
    tab_iota = jax.lax.broadcasted_iota(jnp.int32, (rows, n_rows), 1)
    onehot = (tab_iota == idx).astype(f32)
    comm = (jnp.dot(onehot, e_fused_ref[...], preferred_element_type=f32)
            + b_lce_ref[...])

    # --- LSTMCell (obs_encoder folded into the input-gate weights) ----------
    # gate order i, f, g, o as torch.nn.LSTMCell
    gates = (jnp.dot(obs, w_gate_x_ref[...], preferred_element_type=f32)
             + jnp.dot(h_prev, w_gate_h_ref[...], preferred_element_type=f32)
             + b_gate_ref[...])
    i_g = jax.nn.sigmoid(gates[:, 0:hid])
    f_g = jax.nn.sigmoid(gates[:, hid:2 * hid])
    g_g = jnp.tanh(gates[:, 2 * hid:3 * hid])
    o_g = jax.nn.sigmoid(gates[:, 3 * hid:4 * hid])
    c_new = f_g * c_prev + i_g * g_g
    h_new = o_g * jnp.tanh(c_new)

    # --- value head + all action heads in one split-weight matmul -----------
    # (equivalent to Linear(cat(h, comm)) for every head; no lane concat)
    logits = (jnp.dot(h_new, w_out_h_ref[...], preferred_element_type=f32)
              + jnp.dot(comm, w_out_c_ref[...], preferred_element_type=f32)
              + b_out_ref[...])

    # --- pack everything into one lane-dense output slab ---------------------
    out_ref[:, 0:hid] = h_new
    out_ref[:, hid:2 * hid] = c_new
    base = 2 * hid
    out_ref[:, base:base + 1] = logits[:, 0:1]          # value (no softmax)
    off = 1
    for a in head_sizes:                                 # static python loop
        seg = logits[:, off:off + a]
        m = jnp.max(seg, axis=-1, keepdims=True)
        z = seg - m
        lse = jnp.log(jnp.sum(jnp.exp(z), axis=-1, keepdims=True))
        out_ref[:, base + off:base + off + a] = z - lse  # log_softmax
        off += a
    used = base + off
    if out_cols > used:                                  # zero the pad tail
        out_ref[:, used:out_cols] = jnp.zeros((rows, out_cols - used), f32)


def _vmem_specs(k):
    return [pl.BlockSpec(memory_space=pltpu.MemorySpace.VMEM) for _ in range(k)]


# ----------------------------------------------------------------------------
# Parameter initialization (deterministic, synthetic) with offline folding.
# ----------------------------------------------------------------------------
def init_params(key, num_inputs, hid, cb_hidden, cb_size, cb_emb, naction_heads):
    def lin(k, out_dim, in_dim):
        kw, kb = jax.random.split(k)
        w = jax.random.normal(kw, (out_dim, in_dim), jnp.float32) * 0.1
        b = jax.random.normal(kb, (out_dim,), jnp.float32) * 0.01
        return w, b

    keys = jax.random.split(key, 9 + len(naction_heads))
    w_obs, b_obs = lin(keys[0], hid, num_inputs)          # obs_encoder
    w_cb1, b_cb1 = lin(keys[1], cb_hidden, hid)           # consensus builder L1
    w_cb2, b_cb2 = lin(keys[2], cb_size, cb_hidden)       # consensus builder L2
    emb_table = jax.random.normal(keys[3], (cb_size + 1, cb_emb),
                                  jnp.float32) * 0.1      # embedding_net
    w_lce, b_lce = lin(keys[4], hid, cb_emb)              # latent_consensus_enc
    w_ih, b_ih = lin(keys[5], 4 * hid, hid)               # LSTMCell input
    w_hh, b_hh = lin(keys[6], 4 * hid, hid)               # LSTMCell hidden
    w_v, b_v = lin(keys[7], 1, 2 * hid)                   # value_head
    w_act, b_act = [], []
    for i, a in enumerate(naction_heads):
        wa, ba = lin(keys[8 + i], a, 2 * hid)
        w_act.append(wa)
        b_act.append(ba)

    p = {}
    # Fold obs_encoder into LSTM input weights (exact: encoder is a bare
    # Linear whose output only feeds the LSTM input):
    #   (obs @ Wo.T + bo) @ Wih.T + bih + h @ Whh.T + bhh
    # = obs @ (Wih @ Wo).T + h @ Whh.T + (bo @ Wih.T + bih + bhh)
    p['w_gate_x'] = (w_ih @ w_obs).T                           # (num_in, 4*hid)
    p['w_gate_h'] = w_hh.T                                     # (hid, 4*hid)
    p['b_gate'] = (b_obs @ w_ih.T + b_ih + b_hh)[None, :]      # (1, 4*hid)
    # Consensus-builder student MLP (pre-transposed).
    p['w_cb1_t'], p['b_cb1'] = w_cb1.T, b_cb1[None, :]
    p['w_cb2_t'], p['b_cb2'] = w_cb2.T, b_cb2[None, :]
    # Fold embedding table into latent_consensus_encoder:
    #   onehot @ emb @ W_lce.T == onehot @ (emb @ W_lce.T)
    p['e_fused'] = emb_table @ w_lce.T                         # (cb_size+1, hid)
    p['b_lce'] = b_lce[None, :]
    # Fuse value head + all action heads; split into h-half / comm-half so the
    # kernel never concatenates (h, comm) on the lane axis.
    w_all = jnp.concatenate([w_v] + w_act, axis=0)             # (1+sum_a, 2*hid)
    b_all = jnp.concatenate([b_v] + b_act, axis=0)             # (1+sum_a,)
    p['w_out_h'] = w_all[:, :hid].T                            # (hid, 1+sum_a)
    p['w_out_c'] = w_all[:, hid:].T                            # (hid, 1+sum_a)
    p['b_out'] = b_all[None, :]
    return p


# ----------------------------------------------------------------------------
# Forward wrapper (mirrors MACC.forward with no 'alive_mask' in info)
# ----------------------------------------------------------------------------
def macc_forward(params, obs, hidden_state, cell_state, nagents, naction_heads):
    batch_size = obs.shape[0]
    n = nagents
    hid = hidden_state.shape[-1]
    rows = batch_size * n
    obs_flat = obs.reshape(rows, -1)

    sum_a = sum(naction_heads)
    used = 2 * hid + 1 + sum_a
    out_cols = ((used + 127) // 128) * 128     # lane-dense output slab width

    kernel = functools.partial(_macc_fused_kernel, hid=hid,
                               head_sizes=tuple(naction_heads),
                               out_cols=out_cols)

    inputs = (obs_flat, hidden_state, cell_state,
              params['w_gate_x'], params['w_gate_h'], params['b_gate'],
              params['w_cb1_t'], params['b_cb1'],
              params['w_cb2_t'], params['b_cb2'],
              params['e_fused'], params['b_lce'],
              params['w_out_h'], params['w_out_c'], params['b_out'])

    slab = pl.pallas_call(
        kernel,
        out_shape=jax.ShapeDtypeStruct((rows, out_cols), jnp.float32),
        in_specs=_vmem_specs(len(inputs)),
        out_specs=pl.BlockSpec(memory_space=pltpu.MemorySpace.VMEM),
    )(*inputs)

    # Slice the packed slab (cheap XLA slices, single HBM round-trip).
    h_new = slab[:, 0:hid]
    c_new = slab[:, hid:2 * hid]
    value_head = slab[:, 2 * hid:2 * hid + 1].reshape(batch_size, n, 1)
    action_out = []
    off = 2 * hid + 1
    for a in naction_heads:
        action_out.append(slab[:, off:off + a].reshape(batch_size, n, a))
        off += a
    return action_out, value_head, (h_new, c_new)


if __name__ == "__main__":
    # Small shapes consistent with the module (batch_size = 1 as per docstring)
    B, N, HID = 1, 4, 32
    NUM_INPUTS = 16
    CB_HIDDEN, CB_SIZE, CB_EMB = 16, 8, 8
    NACTION_HEADS = [5, 7]

    key = jax.random.PRNGKey(0)
    kp, kx, kh, kc = jax.random.split(key, 4)

    params = init_params(kp, NUM_INPUTS, HID, CB_HIDDEN, CB_SIZE, CB_EMB,
                         NACTION_HEADS)

    obs = jax.random.normal(kx, (B, N, NUM_INPUTS), jnp.float32)
    hidden_state = jax.random.normal(kh, (B * N, HID), jnp.float32) * 0.1
    cell_state = jax.random.normal(kc, (B * N, HID), jnp.float32) * 0.1

    action_out, value_head, (h1, c1) = macc_forward(
        params, obs, hidden_state, cell_state, N, NACTION_HEADS)

    jax.block_until_ready((action_out, value_head, h1, c1))

    assert value_head.shape == (B, N, 1)
    assert h1.shape == (B * N, HID) and c1.shape == (B * N, HID)
    assert [a.shape for a in action_out] == [(B, N, o) for o in NACTION_HEADS]
    # log_softmax rows must sum to 1 in prob space
    for a in action_out:
        s = jnp.sum(jnp.exp(a), axis=-1)
        assert bool(jnp.all(jnp.abs(s - 1.0) < 1e-4))
    print("KERNEL_OK")
</pallas_src>

<mosaic_0001>
module attributes {stable_mosaic.version = 11 : i64} {
  func.func @_macc_fused_kernel(%arg0: memref<4x16xf32, #tpu.memory_space<vmem>>, %arg1: memref<4x32xf32, #tpu.memory_space<vmem>>, %arg2: memref<4x32xf32, #tpu.memory_space<vmem>>, %arg3: memref<16x128xf32, #tpu.memory_space<vmem>>, %arg4: memref<32x128xf32, #tpu.memory_space<vmem>>, %arg5: memref<1x128xf32, #tpu.memory_space<vmem>>, %arg6: memref<32x16xf32, #tpu.memory_space<vmem>>, %arg7: memref<1x16xf32, #tpu.memory_space<vmem>>, %arg8: memref<16x8xf32, #tpu.memory_space<vmem>>, %arg9: memref<1x8xf32, #tpu.memory_space<vmem>>, %arg10: memref<9x32xf32, #tpu.memory_space<vmem>>, %arg11: memref<1x32xf32, #tpu.memory_space<vmem>>, %arg12: memref<32x13xf32, #tpu.memory_space<vmem>>, %arg13: memref<32x13xf32, #tpu.memory_space<vmem>>, %arg14: memref<1x13xf32, #tpu.memory_space<vmem>>, %arg15: memref<4x128xf32, #tpu.memory_space<vmem>>) attributes {dimension_semantics = [], scalar_prefetch = 0 : i64, scratch_operands = 0 : i64, tpu.core_type = #tpu.core_type<tc>} {
    %c0 = arith.constant 0 : index
    %c0_0 = arith.constant 0 : index
    %0 = vector.load %arg0[%c0, %c0_0] : memref<4x16xf32, #tpu.memory_space<vmem>>, vector<4x16xf32>
    %c0_1 = arith.constant 0 : index
    %c0_2 = arith.constant 0 : index
    %1 = vector.load %arg1[%c0_1, %c0_2] : memref<4x32xf32, #tpu.memory_space<vmem>>, vector<4x32xf32>
    %c0_3 = arith.constant 0 : index
    %c0_4 = arith.constant 0 : index
    %2 = vector.load %arg2[%c0_3, %c0_4] : memref<4x32xf32, #tpu.memory_space<vmem>>, vector<4x32xf32>
    %c0_5 = arith.constant 0 : index
    %c0_6 = arith.constant 0 : index
    %3 = vector.load %arg6[%c0_5, %c0_6] : memref<32x16xf32, #tpu.memory_space<vmem>>, vector<32x16xf32>
    %cst = arith.constant dense<0.000000e+00> : vector<4x16xf32>
    %4 = tpu.matmul %1, %3, %cst {dimension_numbers = #tpu.dot_dimension_numbers<[1], [0], [0], [1], [0, 0, 1, 1], [], []>} : vector<4x32xf32>, vector<32x16xf32>, vector<4x16xf32> -> vector<4x16xf32>
    %c0_7 = arith.constant 0 : index
    %c0_8 = arith.constant 0 : index
    %5 = vector.load %arg7[%c0_7, %c0_8] : memref<1x16xf32, #tpu.memory_space<vmem>>, vector<1x16xf32>
    %6 = vector.broadcast %5 : vector<1x16xf32> to vector<4x16xf32>
    %7 = arith.addf %4, %6 : vector<4x16xf32>
    %cst_9 = arith.constant 0.000000e+00 : f32
    %8 = vector.broadcast %cst_9 : f32 to vector<4x16xf32>
    %9 = arith.maximumf %7, %8 : vector<4x16xf32>
    %c0_10 = arith.constant 0 : index
    %c0_11 = arith.constant 0 : index
    %10 = vector.load %arg8[%c0_10, %c0_11] : memref<16x8xf32, #tpu.memory_space<vmem>>, vector<16x8xf32>
    %cst_12 = arith.constant dense<0.000000e+00> : vector<4x8xf32>
    %11 = tpu.matmul %9, %10, %cst_12 {dimension_numbers = #tpu.dot_dimension_numbers<[1], [0], [0], [1], [0, 0, 1, 1], [], []>} : vector<4x16xf32>, vector<16x8xf32>, vector<4x8xf32> -> vector<4x8xf32>
    %c0_13 = arith.constant 0 : index
    %c0_14 = arith.constant 0 : index
    %12 = vector.load %arg9[%c0_13, %c0_14] : memref<1x8xf32, #tpu.memory_space<vmem>>, vector<1x8xf32>
    %13 = vector.broadcast %12 : vector<1x8xf32> to vector<4x8xf32>
    %14 = arith.addf %11, %13 : vector<4x8xf32>
    %cst_15 = arith.constant dense<0xFF800000> : vector<4xf32>
    %15 = vector.multi_reduction <maximumf>, %14, %cst_15 [1] : vector<4x8xf32> to vector<4xf32>
    %16 = vector.shape_cast %15 : vector<4xf32> to vector<4x1xf32>
    %17 = tpu.iota {dimensions = array<i32: 1>} : vector<4x8xi32>
    %18 = vector.broadcast %16 : vector<4x1xf32> to vector<4x8xf32>
    %19 = arith.cmpf oge, %14, %18 : vector<4x8xf32>
    %c9_i32 = arith.constant 9 : i32
    %20 = vector.broadcast %c9_i32 : i32 to vector<4x8xi32>
    %21 = arith.select %19, %17, %20 : vector<4x8xi1>, vector<4x8xi32>
    %cst_16 = arith.constant dense<2147483647> : vector<4xi32>
    %22 = vector.multi_reduction <minsi>, %21, %cst_16 [1] : vector<4x8xi32> to vector<4xi32>
    %23 = vector.shape_cast %22 : vector<4xi32> to vector<4x1xi32>
    %24 = tpu.iota {dimensions = array<i32: 1>} : vector<4x9xi32>
    %25 = vector.broadcast %23 : vector<4x1xi32> to vector<4x9xi32>
    %26 = arith.cmpi eq, %24, %25 : vector<4x9xi32>
    %27 = arith.extui %26 : vector<4x9xi1> to vector<4x9xi32>
    %28 = arith.sitofp %27 : vector<4x9xi32> to vector<4x9xf32>
    %c0_17 = arith.constant 0 : index
    %c0_18 = arith.constant 0 : index
    %29 = vector.load %arg10[%c0_17, %c0_18] : memref<9x32xf32, #tpu.memory_space<vmem>>, vector<9x32xf32>
    %cst_19 = arith.constant dense<0.000000e+00> : vector<4x32xf32>
    %30 = tpu.matmul %28, %29, %cst_19 {dimension_numbers = #tpu.dot_dimension_numbers<[1], [0], [0], [1], [0, 0, 1, 1], [], []>} : vector<4x9xf32>, vector<9x32xf32>, vector<4x32xf32> -> vector<4x32xf32>
    %c0_20 = arith.constant 0 : index
    %c0_21 = arith.constant 0 : index
    %31 = vector.load %arg11[%c0_20, %c0_21] : memref<1x32xf32, #tpu.memory_space<vmem>>, vector<1x32xf32>
    %32 = vector.broadcast %31 : vector<1x32xf32> to vector<4x32xf32>
    %33 = arith.addf %30, %32 : vector<4x32xf32>
    %c0_22 = arith.constant 0 : index
    %c0_23 = arith.constant 0 : index
    %34 = vector.load %arg3[%c0_22, %c0_23] : memref<16x128xf32, #tpu.memory_space<vmem>>, vector<16x128xf32>
    %cst_24 = arith.constant dense<0.000000e+00> : vector<4x128xf32>
    %35 = tpu.matmul %0, %34, %cst_24 {dimension_numbers = #tpu.dot_dimension_numbers<[1], [0], [0], [1], [0, 0, 1, 1], [], []>} : vector<4x16xf32>, vector<16x128xf32>, vector<4x128xf32> -> vector<4x128xf32>
    %c0_25 = arith.constant 0 : index
    %c0_26 = arith.constant 0 : index
    %36 = vector.load %arg4[%c0_25, %c0_26] : memref<32x128xf32, #tpu.memory_space<vmem>>, vector<32x128xf32>
    %cst_27 = arith.constant dense<0.000000e+00> : vector<4x128xf32>
    %37 = tpu.matmul %1, %36, %cst_27 {dimension_numbers = #tpu.dot_dimension_numbers<[1], [0], [0], [1], [0, 0, 1, 1], [], []>} : vector<4x32xf32>, vector<32x128xf32>, vector<4x128xf32> -> vector<4x128xf32>
    %38 = arith.addf %35, %37 : vector<4x128xf32>
    %c0_28 = arith.constant 0 : index
    %c0_29 = arith.constant 0 : index
    %39 = vector.load %arg5[%c0_28, %c0_29] : memref<1x128xf32, #tpu.memory_space<vmem>>, vector<1x128xf32>
    %40 = vector.broadcast %39 : vector<1x128xf32> to vector<4x128xf32>
    %41 = arith.addf %38, %40 : vector<4x128xf32>
    %42 = vector.extract_strided_slice %41 {offsets = [0, 0], sizes = [4, 32], strides = [1, 1]} : vector<4x128xf32> to vector<4x32xf32>
    %43 = arith.negf %42 : vector<4x32xf32>
    %44 = math.exp %43 : vector<4x32xf32>
    %cst_30 = arith.constant 1.000000e+00 : f32
    %45 = vector.broadcast %cst_30 : f32 to vector<4x32xf32>
    %46 = arith.addf %45, %44 : vector<4x32xf32>
    %47 = arith.divf %45, %46 : vector<4x32xf32>
    %48 = vector.extract_strided_slice %41 {offsets = [0, 32], sizes = [4, 32], strides = [1, 1]} : vector<4x128xf32> to vector<4x32xf32>
    %49 = arith.negf %48 : vector<4x32xf32>
    %50 = math.exp %49 : vector<4x32xf32>
    %cst_31 = arith.constant 1.000000e+00 : f32
    %51 = vector.broadcast %cst_31 : f32 to vector<4x32xf32>
    %52 = arith.addf %51, %50 : vector<4x32xf32>
    %53 = arith.divf %51, %52 : vector<4x32xf32>
    %54 = vector.extract_strided_slice %41 {offsets = [0, 64], sizes = [4, 32], strides = [1, 1]} : vector<4x128xf32> to vector<4x32xf32>
    %55 = math.tanh %54 : vector<4x32xf32>
    %56 = vector.extract_strided_slice %41 {offsets = [0, 96], sizes = [4, 32], strides = [1, 1]} : vector<4x128xf32> to vector<4x32xf32>
    %57 = arith.negf %56 : vector<4x32xf32>
    %58 = math.exp %57 : vector<4x32xf32>
    %cst_32 = arith.constant 1.000000e+00 : f32
    %59 = vector.broadcast %cst_32 : f32 to vector<4x32xf32>
    %60 = arith.addf %59, %58 : vector<4x32xf32>
    %61 = arith.divf %59, %60 : vector<4x32xf32>
    %62 = arith.mulf %53, %2 : vector<4x32xf32>
    %63 = arith.mulf %47, %55 : vector<4x32xf32>
    %64 = arith.addf %62, %63 : vector<4x32xf32>
    %65 = math.tanh %64 : vector<4x32xf32>
    %66 = arith.mulf %61, %65 : vector<4x32xf32>
    %c0_33 = arith.constant 0 : index
    %c0_34 = arith.constant 0 : index
    %67 = vector.load %arg12[%c0_33, %c0_34] : memref<32x13xf32, #tpu.memory_space<vmem>>, vector<32x13xf32>
    %cst_35 = arith.constant dense<0.000000e+00> : vector<4x13xf32>
    %68 = tpu.matmul %66, %67, %cst_35 {dimension_numbers = #tpu.dot_dimension_numbers<[1], [0], [0], [1], [0, 0, 1, 1], [], []>} : vector<4x32xf32>, vector<32x13xf32>, vector<4x13xf32> -> vector<4x13xf32>
    %c0_36 = arith.constant 0 : index
    %c0_37 = arith.constant 0 : index
    %69 = vector.load %arg13[%c0_36, %c0_37] : memref<32x13xf32, #tpu.memory_space<vmem>>, vector<32x13xf32>
    %cst_38 = arith.constant dense<0.000000e+00> : vector<4x13xf32>
    %70 = tpu.matmul %33, %69, %cst_38 {dimension_numbers = #tpu.dot_dimension_numbers<[1], [0], [0], [1], [0, 0, 1, 1], [], []>} : vector<4x32xf32>, vector<32x13xf32>, vector<4x13xf32> -> vector<4x13xf32>
    %71 = arith.addf %68, %70 : vector<4x13xf32>
    %c0_39 = arith.constant 0 : index
    %c0_40 = arith.constant 0 : index
    %72 = vector.load %arg14[%c0_39, %c0_40] : memref<1x13xf32, #tpu.memory_space<vmem>>, vector<1x13xf32>
    %73 = vector.broadcast %72 : vector<1x13xf32> to vector<4x13xf32>
    %74 = arith.addf %71, %73 : vector<4x13xf32>
    %c0_41 = arith.constant 0 : index
    %c0_42 = arith.constant 0 : index
    %75 = vector.load %arg15[%c0_41, %c0_42] : memref<4x128xf32, #tpu.memory_space<vmem>>, vector<4x32xf32>
    tpu.vector_store %arg15[%c0_41, %c0_42], %66 {strides = array<i32>} : memref<4x128xf32, #tpu.memory_space<vmem>>, vector<4x32xf32>,
    %c0_43 = arith.constant 0 : index
    %c32 = arith.constant 32 : index
    %76 = vector.load %arg15[%c0_43, %c32] : memref<4x128xf32, #tpu.memory_space<vmem>>, vector<4x32xf32>
    tpu.vector_store %arg15[%c0_43, %c32], %64 {strides = array<i32>} : memref<4x128xf32, #tpu.memory_space<vmem>>, vector<4x32xf32>,
    %77 = vector.extract_strided_slice %74 {offsets = [0, 0], sizes = [4, 1], strides = [1, 1]} : vector<4x13xf32> to vector<4x1xf32>
    %c0_44 = arith.constant 0 : index
    %c64 = arith.constant 64 : index
    %78 = vector.load %arg15[%c0_44, %c64] : memref<4x128xf32, #tpu.memory_space<vmem>>, vector<4x1xf32>
    tpu.vector_store %arg15[%c0_44, %c64], %77 {strides = array<i32>} : memref<4x128xf32, #tpu.memory_space<vmem>>, vector<4x1xf32>,
    %79 = vector.extract_strided_slice %74 {offsets = [0, 1], sizes = [4, 5], strides = [1, 1]} : vector<4x13xf32> to vector<4x5xf32>
    %cst_45 = arith.constant dense<0xFF800000> : vector<4xf32>
    %80 = vector.multi_reduction <maximumf>, %79, %cst_45 [1] : vector<4x5xf32> to vector<4xf32>
    %81 = vector.shape_cast %80 : vector<4xf32> to vector<4x1xf32>
    %82 = vector.broadcast %81 : vector<4x1xf32> to vector<4x5xf32>
    %83 = arith.subf %79, %82 : vector<4x5xf32>
    %84 = math.exp %83 : vector<4x5xf32>
    %cst_46 = arith.constant dense<0.000000e+00> : vector<4xf32>
    %85 = vector.multi_reduction <add>, %84, %cst_46 [1] : vector<4x5xf32> to vector<4xf32>
    %86 = vector.shape_cast %85 : vector<4xf32> to vector<4x1xf32>
    %87 = math.log %86 : vector<4x1xf32>
    %88 = vector.broadcast %87 : vector<4x1xf32> to vector<4x5xf32>
    %89 = arith.subf %83, %88 : vector<4x5xf32>
    %c0_47 = arith.constant 0 : index
    %c65 = arith.constant 65 : index
    %90 = vector.load %arg15[%c0_47, %c65] : memref<4x128xf32, #tpu.memory_space<vmem>>, vector<4x5xf32>
    tpu.vector_store %arg15[%c0_47, %c65], %89 {strides = array<i32>} : memref<4x128xf32, #tpu.memory_space<vmem>>, vector<4x5xf32>,
    %91 = vector.extract_strided_slice %74 {offsets = [0, 6], sizes = [4, 7], strides = [1, 1]} : vector<4x13xf32> to vector<4x7xf32>
    %cst_48 = arith.constant dense<0xFF800000> : vector<4xf32>
    %92 = vector.multi_reduction <maximumf>, %91, %cst_48 [1] : vector<4x7xf32> to vector<4xf32>
    %93 = vector.shape_cast %92 : vector<4xf32> to vector<4x1xf32>
    %94 = vector.broadcast %93 : vector<4x1xf32> to vector<4x7xf32>
    %95 = arith.subf %91, %94 : vector<4x7xf32>
    %96 = math.exp %95 : vector<4x7xf32>
    %cst_49 = arith.constant dense<0.000000e+00> : vector<4xf32>
    %97 = vector.multi_reduction <add>, %96, %cst_49 [1] : vector<4x7xf32> to vector<4xf32>
    %98 = vector.shape_cast %97 : vector<4xf32> to vector<4x1xf32>
    %99 = math.log %98 : vector<4x1xf32>
    %100 = vector.broadcast %99 : vector<4x1xf32> to vector<4x7xf32>
    %101 = arith.subf %95, %100 : vector<4x7xf32>
    %c0_50 = arith.constant 0 : index
    %c70 = arith.constant 70 : index
    %102 = vector.load %arg15[%c0_50, %c70] : memref<4x128xf32, #tpu.memory_space<vmem>>, vector<4x7xf32>
    tpu.vector_store %arg15[%c0_50, %c70], %101 {strides = array<i32>} : memref<4x128xf32, #tpu.memory_space<vmem>>, vector<4x7xf32>,
    %cst_51 = arith.constant 0.000000e+00 : f32
    %103 = vector.broadcast %cst_51 : f32 to vector<4x51xf32>
    %c0_52 = arith.constant 0 : index
    %c77 = arith.constant 77 : index
    %104 = vector.load %arg15[%c0_52, %c77] : memref<4x128xf32, #tpu.memory_space<vmem>>, vector<4x51xf32>
    tpu.vector_store %arg15[%c0_52, %c77], %103 {strides = array<i32>} : memref<4x128xf32, #tpu.memory_space<vmem>>, vector<4x51xf32>,
    return
  }
}

</mosaic_0001>

<llo_original>
// kernel: tpu_custom_call.1
$region0: #{tpu_custom_call.1}
  #allocation0 [shape = 'u32[]', space=smem, size = 0x4, offset = 0x4, fixed_abs, tag = 'smem constant byte address 0x4 - core index']
  #allocation1 [shape = 'u32[144,128]{1,0:T(1,128)}', space=vmem, size = 0x12000, scoped, tag = 'internal scratch']
  %s0 = inlined_call_operand.vmem [shape: f32[4,16], index: 0, kind: input, shape index: {}]
  %s1 = inlined_call_operand.vmem [shape: f32[4,32], index: 1, kind: input, shape index: {}]
  %s2 = inlined_call_operand.vmem [shape: f32[4,32], index: 2, kind: input, shape index: {}]
  %s3 = inlined_call_operand.vmem [shape: f32[16,128], index: 3, kind: input, shape index: {}]
  %s4 = inlined_call_operand.vmem [shape: f32[32,128], index: 4, kind: input, shape index: {}]
  %s5 = inlined_call_operand.vmem [shape: f32[1,128], index: 5, kind: input, shape index: {}]
  %s6 = inlined_call_operand.vmem [shape: f32[32,16], index: 6, kind: input, shape index: {}]
  %s7 = inlined_call_operand.vmem [shape: f32[1,16], index: 7, kind: input, shape index: {}]
  %s8 = inlined_call_operand.vmem [shape: f32[16,8], index: 8, kind: input, shape index: {}]
  %s9 = inlined_call_operand.vmem [shape: f32[1,8], index: 9, kind: input, shape index: {}]
  %s10 = inlined_call_operand.vmem [shape: f32[9,32], index: 10, kind: input, shape index: {}]
  %s11 = inlined_call_operand.vmem [shape: f32[1,32], index: 11, kind: input, shape index: {}]
  %s12 = inlined_call_operand.vmem [shape: f32[32,13], index: 12, kind: input, shape index: {}]
  %s13 = inlined_call_operand.vmem [shape: f32[32,13], index: 13, kind: input, shape index: {}]
  %s14 = inlined_call_operand.vmem [shape: f32[1,13], index: 14, kind: input, shape index: {}]
  %s15 = inlined_call_operand.hbm [shape: f32[4,128], index: 15, kind: output, shape index: {}]
  %s16 = sld [smem:[#allocation0]]
  $region70: #{tpu_custom_call.1} parent=0
    _
  %s18 = ssub.s32 1, %s16
  %s19 = scalar_select 0, %s18, %s16
  $region1: #{tpu_custom_call.1} parent=0
    #allocation2 [shape = 'u8[2048]{0}', space=vmem, size = 0x800, scoped, tag = 'output window, operand 0, single buffered']
    #allocation3 [shape = 's32[1]{0}', space=sflag, size = 0x4, scoped, tag = 'scoped memory for tpu_custom_call.1']
    %20 = vsyncpa [#allocation3], 0
    // Predicated region
    $region2: #{tpu_custom_call.1} parent=1 // pred_check
      _
    $region3: #{tpu_custom_call.1} parent=1 // pred_check_branch
      %22 = sbr.rel (0) target = $region5
    $region4: #{tpu_custom_call.1} parent=1 // pred_region
      _
    $region5: #{tpu_custom_call.1} parent=1 // pred_fallthru
      _
    // Predicated region
    $region6: #{tpu_custom_call.1} parent=1 // pred_check
      _
    $region7: #{tpu_custom_call.1} parent=1 // pred_check_branch
      %24 = sbr.rel (0) target = $region9
    $region8: #{tpu_custom_call.1} parent=1 // pred_region
      _
    $region9: #{tpu_custom_call.1} parent=1 // pred_fallthru
      _
    // Predicated region
    $region10: #{tpu_custom_call.1} parent=1 // pred_check
      _
    $region11: #{tpu_custom_call.1} parent=1 // pred_check_branch
      %26 = sbr.rel (0) target = $region13
    $region12: #{tpu_custom_call.1} parent=1 // pred_region
      _
    $region13: #{tpu_custom_call.1} parent=1 // pred_fallthru
      _
    // Predicated region
    $region14: #{tpu_custom_call.1} parent=1 // pred_check
      _
    $region15: #{tpu_custom_call.1} parent=1 // pred_check_branch
      %28 = sbr.rel (0) target = $region17
    $region16: #{tpu_custom_call.1} parent=1 // pred_region
      _
    $region17: #{tpu_custom_call.1} parent=1 // pred_fallthru
      _
    // Predicated region
    $region18: #{tpu_custom_call.1} parent=1 // pred_check
      _
    $region19: #{tpu_custom_call.1} parent=1 // pred_check_branch
      %30 = sbr.rel (0) target = $region21
    $region20: #{tpu_custom_call.1} parent=1 // pred_region
      _
    $region21: #{tpu_custom_call.1} parent=1 // pred_fallthru
      _
    // Predicated region
    $region22: #{tpu_custom_call.1} parent=1 // pred_check
      _
    $region23: #{tpu_custom_call.1} parent=1 // pred_check_branch
      %32 = sbr.rel (0) target = $region25
    $region24: #{tpu_custom_call.1} parent=1 // pred_region
      _
    $region25: #{tpu_custom_call.1} parent=1 // pred_fallthru
      _
    // Predicated region
    $region26: #{tpu_custom_call.1} parent=1 // pred_check
      _
    $region27: #{tpu_custom_call.1} parent=1 // pred_check_branch
      %34 = sbr.rel (0) target = $region29
    $region28: #{tpu_custom_call.1} parent=1 // pred_region
      _
    $region29: #{tpu_custom_call.1} parent=1 // pred_fallthru
      _
    // Predicated region
    $region30: #{tpu_custom_call.1} parent=1 // pred_check
      _
    $region31: #{tpu_custom_call.1} parent=1 // pred_check_branch
      %36 = sbr.rel (0) target = $region33
    $region32: #{tpu_custom_call.1} parent=1 // pred_region
      _
    $region33: #{tpu_custom_call.1} parent=1 // pred_fallthru
      _
    // Predicated region
    $region34: #{tpu_custom_call.1} parent=1 // pred_check
      _
    $region35: #{tpu_custom_call.1} parent=1 // pred_check_branch
      %38 = sbr.rel (0) target = $region37
    $region36: #{tpu_custom_call.1} parent=1 // pred_region
      _
    $region37: #{tpu_custom_call.1} parent=1 // pred_fallthru
      _
    // Predicated region
    $region38: #{tpu_custom_call.1} parent=1 // pred_check
      _
    $region39: #{tpu_custom_call.1} parent=1 // pred_check_branch
      %40 = sbr.rel (0) target = $region41
    $region40: #{tpu_custom_call.1} parent=1 // pred_region
      _
    $region41: #{tpu_custom_call.1} parent=1 // pred_fallthru
      _
    // Predicated region
    $region42: #{tpu_custom_call.1} parent=1 // pred_check
      _
    $region43: #{tpu_custom_call.1} parent=1 // pred_check_branch
      %42 = sbr.rel (0) target = $region45
    $region44: #{tpu_custom_call.1} parent=1 // pred_region
      _
    $region45: #{tpu_custom_call.1} parent=1 // pred_fallthru
      _
    // Predicated region
    $region46: #{tpu_custom_call.1} parent=1 // pred_check
      _
    $region47: #{tpu_custom_call.1} parent=1 // pred_check_branch
      %44 = sbr.rel (0) target = $region49
    $region48: #{tpu_custom_call.1} parent=1 // pred_region
      _
    $region49: #{tpu_custom_call.1} parent=1 // pred_fallthru
      _
    // Predicated region
    $region50: #{tpu_custom_call.1} parent=1 // pred_check
      _
    $region51: #{tpu_custom_call.1} parent=1 // pred_check_branch
      %46 = sbr.rel (0) target = $region53
    $region52: #{tpu_custom_call.1} parent=1 // pred_region
      _
    $region53: #{tpu_custom_call.1} parent=1 // pred_fallthru
      _
    // Predicated region
    $region54: #{tpu_custom_call.1} parent=1 // pred_check
      _
    $region55: #{tpu_custom_call.1} parent=1 // pred_check_branch
      %48 = sbr.rel (0) target = $region57
    $region56: #{tpu_custom_call.1} parent=1 // pred_region
      _
    $region57: #{tpu_custom_call.1} parent=1 // pred_fallthru
      _
    // Predicated region
    $region58: #{tpu_custom_call.1} parent=1 // pred_check
      _
    $region59: #{tpu_custom_call.1} parent=1 // pred_check_branch
      %50 = sbr.rel (0) target = $region61
    $region60: #{tpu_custom_call.1} parent=1 // pred_region
      _
    $region61: #{tpu_custom_call.1} parent=1 // pred_fallthru
      _
    %v51 = vld [vmem:[%s0] sm:$0xf]
    %v52 = vld [vmem:[%s1] sm:$0xf]
    %v53 = vld [vmem:[%s2] sm:$0xf]
    %v54 = vld [vmem:[%s6] sm:$0xff]
    %v55 = vld [vmem:[%s6 + $0x8] sm:$0xff]
    %v56 = vld [vmem:[%s6 + $0x10] sm:$0xff]
    %v57 = vld [vmem:[%s6 + $0x18] sm:$0xff]
    %v58 = vld [vmem:[%s7] sm:$0x1]
    %v60 = vlaneseq
    %v61 = vshrl.u32 %v60, 7
    %v62 = vsub.s32 0, %v61
    %v63 = vrot.slane %v58, %v62
    %vm65 = vcmask 261120
    %v67 = vsel %vm65, %v52, 0
    %69 = vmatprep.subr.mxu0 0.0
    %70 = vmatpush1.msra.mxu0 %v54
    %71 = vmatprep.subr.mxu0 0.0
    %72 = vmatpush1.msra.mxu0 %v55
    %73 = vmatprep.subr.mxu0 0.0
    %74 = vmatpush1.msra.mxu0 %v56
    %75 = vmatprep.subr.mxu0 0.0
    %76 = vmatpush1.msra.mxu0 %v57
    %77 = vmatprep.subr.mxu0 0.0
    %78 = vmatpush1.msra.mxu0 0.0
    %79 = vmatprep.subr.mxu0 0.0
    %80 = vmatpush1.msra.mxu0 0.0
    %81 = vmatprep.subr.mxu0 0.0
    %82 = vmatpush1.msra.mxu0 0.0
    %83 = vmatprep.subr.mxu0 0.0
    %84 = vmatpush1.msra.mxu0 0.0
    %85 = vmatprep.subr.mxu0 0.0
    %86 = vmatpush1.msra.mxu0 0.0
    %87 = vmatprep.subr.mxu0 0.0
    %88 = vmatpush1.msra.mxu0 0.0
    %89 = vmatprep.subr.mxu0 0.0
    %90 = vmatpush1.msra.mxu0 0.0
    %91 = vmatprep.subr.mxu0 0.0
    %92 = vmatpush1.msra.mxu0 0.0
    %93 = vmatprep.subr.mxu0 0.0
    %94 = vmatpush1.msra.mxu0 0.0
    %95 = vmatprep.subr.mxu0 0.0
    %96 = vmatpush1.msra.mxu0 0.0
    %97 = vmatprep.subr.mxu0 0.0
    %98 = vmatpush1.msra.mxu0 0.0
    %99 = vmatprep.subr.mxu0 0.0
    %100 = vmatpush1.msra.mxu0 0.0
    %101 = vmatprep.subr.mxu0 0.0
    %102 = vmatpush1.msra.mxu0 0.0
    %103 = vmatprep.subr.mxu0 0.0
    %104 = vmatpush1.msra.mxu0 0.0
    %105 = vmatprep.subr.mxu0 0.0
    %106 = vmatpush1.msra.mxu0 0.0
    %107 = vmatprep.subr.mxu0 0.0
    %108 = vmatpush1.msra.mxu0 0.0
    %109 = vmatprep.subr.mxu0 0.0
    %110 = vmatpush1.msra.mxu0 0.0
    %111 = vmatprep.subr.mxu0 0.0
    %112 = vmatpush1.msra.mxu0 0.0
    %113 = vmatprep.subr.mxu0 0.0
    %114 = vmatpush1.msra.mxu0 0.0
    %115 = vmatprep.subr.mxu0 0.0
    %116 = vmatpush1.msra.mxu0 0.0
    %117 = vmatprep.subr.mxu0 0.0
    %118 = vmatpush1.msra.mxu0 0.0
    %119 = vmatprep.subr.mxu0 0.0
    %120 = vmatpush1.msra.mxu0 0.0
    %121 = vmatprep.subr.mxu0 0.0
    %122 = vmatpush1.msra.mxu0 0.0
    %123 = vmatprep.subr.mxu0 0.0
    %124 = vmatpush1.msra.mxu0 0.0
    %125 = vmatprep.subr.mxu0 0.0
    %126 = vmatpush1.msra.mxu0 0.0
    %127 = vmatprep.subr.mxu0 0.0
    %128 = vmatpush1.msra.mxu0 0.0
    %129 = vmatprep.subr.mxu0 0.0
    %130 = vmatpush1.msra.mxu0 0.0
    %131 = vmatprep.subr.mxu0 0.0
    %132 = vmatpush1.msra.mxu0 0.0
    %133 = vmatprep.mubr.f32.mxu0 0.0
    %134 = vmatmul.mubr.f32.gmra.mrb[0].mxu0 %v67
    %v135 = vpop.f32.mrb[0].mxu0
    %v136 = vadd.f32 %v63, %v135
    %v137 = vpop.f32.mrb[0].mxu0
    %138 = vdwg.mxu0
    %v139 = vmax.f32 %v136, 0.0
    %v140 = vld [vmem:[%s8] sm:$0xff]
    %v141 = vld [vmem:[%s8 + $0x8] sm:$0xff]
    %v142 = vld [vmem:[%s9] sm:$0x1]
    %v144 = vlaneseq
    %v145 = vshrl.u32 %v144, 7
    %v146 = vsub.s32 0, %v145
    %v147 = vrot.slane %v142, %v146
    %vm149 = vcmask 130048
    %v151 = vsel %vm149, %v139, 0
    %153 = vmatprep.subr.mxu0 0.0
    %154 = vmatpush1.msra.mxu0 %v140
    %155 = vmatprep.subr.mxu0 0.0
    %156 = vmatpush1.msra.mxu0 %v141
    %157 = vmatprep.subr.mxu0 0.0
    %158 = vmatpush1.msra.mxu0 0.0
    %159 = vmatprep.subr.mxu0 0.0
    %160 = vmatpush1.msra.mxu0 0.0
    %161 = vmatprep.subr.mxu0 0.0
    %162 = vmatpush1.msra.mxu0 0.0
    %163 = vmatprep.subr.mxu0 0.0
    %164 = vmatpush1.msra.mxu0 0.0
    %165 = vmatprep.subr.mxu0 0.0
    %166 = vmatpush1.msra.mxu0 0.0
    %167 = vmatprep.subr.mxu0 0.0
    %168 = vmatpush1.msra.mxu0 0.0
    %169 = vmatprep.subr.mxu0 0.0
    %170 = vmatpush1.msra.mxu0 0.0
    %171 = vmatprep.subr.mxu0 0.0
    %172 = vmatpush1.msra.mxu0 0.0
    %173 = vmatprep.subr.mxu0 0.0
    %174 = vmatpush1.msra.mxu0 0.0
    %175 = vmatprep.subr.mxu0 0.0
    %176 = vmatpush1.msra.mxu0 0.0
    %177 = vmatprep.subr.mxu0 0.0
    %178 = vmatpush1.msra.mxu0 0.0
    %179 = vmatprep.subr.mxu0 0.0
    %180 = vmatpush1.msra.mxu0 0.0
    %181 = vmatprep.subr.mxu0 0.0
    %182 = vmatpush1.msra.mxu0 0.0
    %183 = vmatprep.subr.mxu0 0.0
    %184 = vmatpush1.msra.mxu0 0.0
    %185 = vmatprep.subr.mxu0 0.0
    %186 = vmatpush1.msra.mxu0 0.0
    %187 = vmatprep.subr.mxu0 0.0
    %188 = vmatpush1.msra.mxu0 0.0
    %189 = vmatprep.subr.mxu0 0.0
    %190 = vmatpush1.msra.mxu0 0.0
    %191 = vmatprep.subr.mxu0 0.0
    %192 = vmatpush1.msra.mxu0 0.0
    %193 = vmatprep.subr.mxu0 0.0
    %194 = vmatpush1.msra.mxu0 0.0
    %195 = vmatprep.subr.mxu0 0.0
    %196 = vmatpush1.msra.mxu0 0.0
    %197 = vmatprep.subr.mxu0 0.0
    %198 = vmatpush1.msra.mxu0 0.0
    %199 = vmatprep.subr.mxu0 0.0
    %200 = vmatpush1.msra.mxu0 0.0
    %201 = vmatprep.subr.mxu0 0.0
    %202 = vmatpush1.msra.mxu0 0.0
    %203 = vmatprep.subr.mxu0 0.0
    %204 = vmatpush1.msra.mxu0 0.0
    %205 = vmatprep.subr.mxu0 0.0
    %206 = vmatpush1.msra.mxu0 0.0
    %207 = vmatprep.subr.mxu0 0.0
    %208 = vmatpush1.msra.mxu0 0.0
    %209 = vmatprep.subr.mxu0 0.0
    %210 = vmatpush1.msra.mxu0 0.0
    %211 = vmatprep.subr.mxu0 0.0
    %212 = vmatpush1.msra.mxu0 0.0
    %213 = vmatprep.subr.mxu0 0.0
    %214 = vmatpush1.msra.mxu0 0.0
    %215 = vmatprep.subr.mxu0 0.0
    %216 = vmatpush1.msra.mxu0 0.0
    %217 = vmatprep.mubr.f32.mxu0 0.0
    %218 = vmatmul.mubr.f32.gmra.mrb[0].mxu0 %v151
    %v219 = vpop.f32.mrb[0].mxu0
    %v220 = vadd.f32 %v147, %v219
    %v221 = vpop.f32.mrb[0].mxu0
    %222 = vdwg.mxu0
    %vm223 = vcmask 60416
    %v224 = vsel %vm223, %v220, -inf
    %225 = vmax.xlane.f32.xlu0 %v224
    %v226 = vpop.xlane.xlu0 %225
    %v227 = vlaneseq
    %v228 = vand.u32 %v227, 127
    %vm229 = vcmp.ge.f32.partialorder %v220, %v226
    %v230 = vsel %vm229, %v228, 9
    %v231 = vsel %vm223, %v230, 2147483647
    %v232 = vand.u32 %v231, 65535
    %v233 = vshra.s32 %v231, 16
    %v234 = vcvt.s32.f32 %v232
    %v235 = vcvt.s32.f32 %v233
    %236 = vmin.xlane.f32.xlu0 %v235
    %v237 = vpop.xlane.xlu0 %236
    %vm238 = vcmp.eq.f32.partialorder %v235, %v237
    %v239 = vsel %vm238, %v234, inf
    %240 = vmin.xlane.f32.xlu0 %v239
    %v241 = vpop.xlane.xlu0 %240
    %v242 = vcvt.f32.s32 %v241
    %v243 = vcvt.f32.s32 %v237
    %v244 = vshll.u32 %v243, 16
    %v245 = vadd.s32 %v244, %v242
    %vm246 = vcmp.eq.s32.totalorder %v228, %v245
    %v247 = vsel %vm246, 1, 0
    %v248 = vcvt.s32.f32 %v247
    %v249 = vld [vmem:[%s10] sm:$0xff]
    %v250 = vld [vmem:[%s10 + $0x8] sm:$0x1]
    %v251 = vld [vmem:[%s11] sm:$0x1]
    %v253 = vlaneseq
    %v254 = vshrl.u32 %v253, 7
    %v255 = vsub.s32 0, %v254
    %v256 = vrot.slane %v251, %v255
    %vm258 = vcmask 72704
    %v260 = vsel %vm258, %v248, 0
    %vm262 = vcmask 1040384
    %v264 = vsel %vm262, %v250, 0
    %266 = vmatprep.subr.mxu0 0.0
    %267 = vmatpush1.msra.mxu0 %v249
    %268 = vmatprep.subr.mxu0 0.0
    %269 = vmatpush1.msra.mxu0 %v264
    %270 = vmatprep.subr.mxu0 0.0
    %271 = vmatpush1.msra.mxu0 0.0
    %272 = vmatprep.subr.mxu0 0.0
    %273 = vmatpush1.msra.mxu0 0.0
    %274 = vmatprep.subr.mxu0 0.0
    %275 = vmatpush1.msra.mxu0 0.0
    %276 = vmatprep.subr.mxu0 0.0
    %277 = vmatpush1.msra.mxu0 0.0
    %278 = vmatprep.subr.mxu0 0.0
    %279 = vmatpush1.msra.mxu0 0.0
    %280 = vmatprep.subr.mxu0 0.0
    %281 = vmatpush1.msra.mxu0 0.0
    %282 = vmatprep.subr.mxu0 0.0
    %283 = vmatpush1.msra.mxu0 0.0
    %284 = vmatprep.subr.mxu0 0.0
    %285 = vmatpush1.msra.mxu0 0.0
    %286 = vmatprep.subr.mxu0 0.0
    %287 = vmatpush1.msra.mxu0 0.0
    %288 = vmatprep.subr.mxu0 0.0
    %289 = vmatpush1.msra.mxu0 0.0
    %290 = vmatprep.subr.mxu0 0.0
    %291 = vmatpush1.msra.mxu0 0.0
    %292 = vmatprep.subr.mxu0 0.0
    %293 = vmatpush1.msra.mxu0 0.0
    %294 = vmatprep.subr.mxu0 0.0
    %295 = vmatpush1.msra.mxu0 0.0
    %296 = vmatprep.subr.mxu0 0.0
    %297 = vmatpush1.msra.mxu0 0.0
    %298 = vmatprep.subr.mxu0 0.0
    %299 = vmatpush1.msra.mxu0 0.0
    %300 = vmatprep.subr.mxu0 0.0
    %301 = vmatpush1.msra.mxu0 0.0
    %302 = vmatprep.subr.mxu0 0.0
    %303 = vmatpush1.msra.mxu0 0.0
    %304 = vmatprep.subr.mxu0 0.0
    %305 = vmatpush1.msra.mxu0 0.0
    %306 = vmatprep.subr.mxu0 0.0
    %307 = vmatpush1.msra.mxu0 0.0
    %308 = vmatprep.subr.mxu0 0.0
    %309 = vmatpush1.msra.mxu0 0.0
    %310 = vmatprep.subr.mxu0 0.0
    %311 = vmatpush1.msra.mxu0 0.0
    %312 = vmatprep.subr.mxu0 0.0
    %313 = vmatpush1.msra.mxu0 0.0
    %314 = vmatprep.subr.mxu0 0.0
    %315 = vmatpush1.msra.mxu0 0.0
    %316 = vmatprep.subr.mxu0 0.0
    %317 = vmatpush1.msra.mxu0 0.0
    %318 = vmatprep.subr.mxu0 0.0
    %319 = vmatpush1.msra.mxu0 0.0
    %320 = vmatprep.subr.mxu0 0.0
    %321 = vmatpush1.msra.mxu0 0.0
    %322 = vmatprep.subr.mxu0 0.0
    %323 = vmatpush1.msra.mxu0 0.0
    %324 = vmatprep.subr.mxu0 0.0
    %325 = vmatpush1.msra.mxu0 0.0
    %326 = vmatprep.subr.mxu0 0.0
    %327 = vmatpush1.msra.mxu0 0.0
    %328 = vmatprep.subr.mxu0 0.0
    %329 = vmatpush1.msra.mxu0 0.0
    %330 = vmatprep.mubr.f32.mxu0 0.0
    %331 = vmatmul.mubr.f32.gmra.mrb[0].mxu0 %v260
    %v332 = vpop.f32.mrb[0].mxu0
    %v333 = vadd.f32 %v256, %v332
    %v334 = vpop.f32.mrb[0].mxu0
    %335 = vdwg.mxu0
    %v336 = vld [vmem:[%s3] sm:$0xff]
    %v337 = vld [vmem:[%s3 + $0x8] sm:$0xff]
    %v338 = vld [vmem:[%s4] sm:$0xff]
    %v339 = vld [vmem:[%s4 + $0x8] sm:$0xff]
    %v340 = vld [vmem:[%s4 + $0x10] sm:$0xff]
    %v341 = vld [vmem:[%s4 + $0x18] sm:$0xff]
    %342 = vmatprep.subr.mxu0 0.0
    %343 = vmatpush1.msra.mxu0 %v338
    %344 = vmatprep.subr.mxu0 0.0
    %345 = vmatpush1.msra.mxu0 %v339
    %346 = vmatprep.subr.mxu0 0.0
    %347 = vmatpush1.msra.mxu0 %v340
    %348 = vmatprep.subr.mxu0 0.0
    %349 = vmatpush1.msra.mxu0 %v341
    %350 = vmatprep.subr.mxu0 0.0
    %351 = vmatpush1.msra.mxu0 0.0
    %352 = vmatprep.subr.mxu0 0.0
    %353 = vmatpush1.msra.mxu0 0.0
    %354 = vmatprep.subr.mxu0 0.0
    %355 = vmatpush1.msra.mxu0 0.0
    %356 = vmatprep.subr.mxu0 0.0
    %357 = vmatpush1.msra.mxu0 0.0
    %358 = vmatprep.subr.mxu0 0.0
    %359 = vmatpush1.msra.mxu0 0.0
    %360 = vmatprep.subr.mxu0 0.0
    %361 = vmatpush1.msra.mxu0 0.0
    %362 = vmatprep.subr.mxu0 0.0
    %363 = vmatpush1.msra.mxu0 0.0
    %364 = vmatprep.subr.mxu0 0.0
    %365 = vmatpush1.msra.mxu0 0.0
    %366 = vmatprep.subr.mxu0 0.0
    %367 = vmatpush1.msra.mxu0 0.0
    %368 = vmatprep.subr.mxu0 0.0
    %369 = vmatpush1.msra.mxu0 0.0
    %370 = vmatprep.subr.mxu0 0.0
    %371 = vmatpush1.msra.mxu0 0.0
    %372 = vmatprep.subr.mxu0 0.0
    %373 = vmatpush1.msra.mxu0 0.0
    %374 = vmatprep.subr.mxu0 0.0
    %375 = vmatpush1.msra.mxu0 0.0
    %376 = vmatprep.subr.mxu0 0.0
    %377 = vmatpush1.msra.mxu0 0.0
    %378 = vmatprep.subr.mxu0 0.0
    %379 = vmatpush1.msra.mxu0 0.0
    %380 = vmatprep.subr.mxu0 0.0
    %381 = vmatpush1.msra.mxu0 0.0
    %382 = vmatprep.subr.mxu0 0.0
    %383 = vmatpush1.msra.mxu0 0.0
    %384 = vmatprep.subr.mxu0 0.0
    %385 = vmatpush1.msra.mxu0 0.0
    %386 = vmatprep.subr.mxu0 0.0
    %387 = vmatpush1.msra.mxu0 0.0
    %388 = vmatprep.subr.mxu0 0.0
    %389 = vmatpush1.msra.mxu0 0.0
    %390 = vmatprep.subr.mxu0 0.0
    %391 = vmatpush1.msra.mxu0 0.0
    %392 = vmatprep.subr.mxu0 0.0
    %393 = vmatpush1.msra.mxu0 0.0
    %394 = vmatprep.subr.mxu0 0.0
    %395 = vmatpush1.msra.mxu0 0.0
    %396 = vmatprep.subr.mxu0 0.0
    %397 = vmatpush1.msra.mxu0 0.0
    %398 = vmatprep.subr.mxu0 0.0
    %399 = vmatpush1.msra.mxu0 0.0
    %400 = vmatprep.subr.mxu0 0.0
    %401 = vmatpush1.msra.mxu0 0.0
    %402 = vmatprep.subr.mxu0 0.0
    %403 = vmatpush1.msra.mxu0 0.0
    %404 = vmatprep.subr.mxu0 0.0
    %405 = vmatpush1.msra.mxu0 0.0
    %406 = vmatprep.mubr.f32.mxu0 0.0
    %407 = vmatmul.mubr.f32.gmra.mrb[0].mxu0 %v67
    %v408 = vpop.f32.mrb[0].mxu0
    %v409 = vadd.f32 0.0, %v408
    %v410 = vpop.f32.mrb[0].mxu0
    %411 = vdwg.mxu0
    %v413 = vsel %vm149, %v51, 0
    %415 = vmatprep.subr.mxu0 0.0
    %416 = vmatpush1.msra.mxu0 %v336
    %417 = vmatprep.subr.mxu0 0.0
    %418 = vmatpush1.msra.mxu0 %v337
    %419 = vmatprep.subr.mxu0 0.0
    %420 = vmatpush1.msra.mxu0 0.0
    %421 = vmatprep.subr.mxu0 0.0
    %422 = vmatpush1.msra.mxu0 0.0
    %423 = vmatprep.subr.mxu0 0.0
    %424 = vmatpush1.msra.mxu0 0.0
    %425 = vmatprep.subr.mxu0 0.0
    %426 = vmatpush1.msra.mxu0 0.0
    %427 = vmatprep.subr.mxu0 0.0
    %428 = vmatpush1.msra.mxu0 0.0
    %429 = vmatprep.subr.mxu0 0.0
    %430 = vmatpush1.msra.mxu0 0.0
    %431 = vmatprep.subr.mxu0 0.0
    %432 = vmatpush1.msra.mxu0 0.0
    %433 = vmatprep.subr.mxu0 0.0
    %434 = vmatpush1.msra.mxu0 0.0
    %435 = vmatprep.subr.mxu0 0.0
    %436 = vmatpush1.msra.mxu0 0.0
    %437 = vmatprep.subr.mxu0 0.0
    %438 = vmatpush1.msra.mxu0 0.0
    %439 = vmatprep.subr.mxu0 0.0
    %440 = vmatpush1.msra.mxu0 0.0
    %441 = vmatprep.subr.mxu0 0.0
    %442 = vmatpush1.msra.mxu0 0.0
    %443 = vmatprep.subr.mxu0 0.0
    %444 = vmatpush1.msra.mxu0 0.0
    %445 = vmatprep.subr.mxu0 0.0
    %446 = vmatpush1.msra.mxu0 0.0
    %447 = vmatprep.subr.mxu0 0.0
    %448 = vmatpush1.msra.mxu0 0.0
    %449 = vmatprep.subr.mxu0 0.0
    %450 = vmatpush1.msra.mxu0 0.0
    %451 = vmatprep.subr.mxu0 0.0
    %452 = vmatpush1.msra.mxu0 0.0
    %453 = vmatprep.subr.mxu0 0.0
    %454 = vmatpush1.msra.mxu0 0.0
    %455 = vmatprep.subr.mxu0 0.0
    %456 = vmatpush1.msra.mxu0 0.0
    %457 = vmatprep.subr.mxu0 0.0
    %458 = vmatpush1.msra.mxu0 0.0
    %459 = vmatprep.subr.mxu0 0.0
    %460 = vmatpush1.msra.mxu0 0.0
    %461 = vmatprep.subr.mxu0 0.0
    %462 = vmatpush1.msra.mxu0 0.0
    %463 = vmatprep.subr.mxu0 0.0
    %464 = vmatpush1.msra.mxu0 0.0
    %465 = vmatprep.subr.mxu0 0.0
    %466 = vmatpush1.msra.mxu0 0.0
    %467 = vmatprep.subr.mxu0 0.0
    %468 = vmatpush1.msra.mxu0 0.0
    %469 = vmatprep.subr.mxu0 0.0
    %470 = vmatpush1.msra.mxu0 0.0
    %471 = vmatprep.subr.mxu0 0.0
    %472 = vmatpush1.msra.mxu0 0.0
    %473 = vmatprep.subr.mxu0 0.0
    %474 = vmatpush1.msra.mxu0 0.0
    %475 = vmatprep.subr.mxu0 0.0
    %476 = vmatpush1.msra.mxu0 0.0
    %477 = vmatprep.subr.mxu0 0.0
    %478 = vmatpush1.msra.mxu0 0.0
    %479 = vmatprep.mubr.f32.mxu0 0.0
    %480 = vmatmul.mubr.f32.gmra.mrb[0].mxu0 %v413
    %v481 = vpop.f32.mrb[0].mxu0
    %v482 = vadd.f32 %v409, %v481
    %v483 = vpop.f32.mrb[0].mxu0
    %484 = vdwg.mxu0
    %v485 = vld [vmem:[%s5] sm:$0x1]
    %v487 = vlaneseq
    %v488 = vshrl.u32 %v487, 7
    %v489 = vsub.s32 0, %v488
    %v490 = vrot.slane %v485, %v489
    %v492 = vadd.f32 %v482, %v490
    %v493 = vxor.u32 %v492, 2147483648
    %v494 = vmul.f32 %v493, 1.442695
    %v495 = vpow.pop %v494
    %v496 = vadd.f32 %v495, 1.0
    %v497 = vrcp.pop %v496
    %v498 = vmul.f32 1.0, %v497
    %v499 = vtanh.pop %v492
    %501 = vrot.lane.b32.xlu0 %v53, 32
    %v502 = vpop.permute.xlu0 %501
    %v504 = vmul.f32 %v498, %v502
    %506 = vrot.lane.b32.xlu0 %v499, 64
    %v507 = vpop.permute.xlu0 %506
    %v509 = vmul.f32 %v498, %v507
    %511 = vrot.lane.b32.xlu0 %v509, 32
    %v512 = vpop.permute.xlu0 %511
    %v514 = vadd.f32 %v504, %v512
    %v515 = vtanh.pop %v514
    %517 = vrot.lane.b32.xlu0 %v515, 64
    %v518 = vpop.permute.xlu0 %517
    %v520 = vmul.f32 %v498, %v518
    %v521 = vld [vmem:[%s12] sm:$0xff]
    %v522 = vld [vmem:[%s12 + $0x8] sm:$0xff]
    %v523 = vld [vmem:[%s12 + $0x10] sm:$0xff]
    %v524 = vld [vmem:[%s12 + $0x18] sm:$0xff]
    %v525 = vld [vmem:[%s13] sm:$0xff]
    %v526 = vld [vmem:[%s13 + $0x8] sm:$0xff]
    %v527 = vld [vmem:[%s13 + $0x10] sm:$0xff]
    %v528 = vld [vmem:[%s13 + $0x18] sm:$0xff]
    %v530 = vsel %vm65, %v333, 0
    %532 = vmatprep.subr.mxu0 0.0
    %533 = vmatpush1.msra.mxu0 %v525
    %534 = vmatprep.subr.mxu0 0.0
    %535 = vmatpush1.msra.mxu0 %v526
    %536 = vmatprep.subr.mxu0 0.0
    %537 = vmatpush1.msra.mxu0 %v527
    %538 = vmatprep.subr.mxu0 0.0
    %539 = vmatpush1.msra.mxu0 %v528
    %540 = vmatprep.subr.mxu0 0.0
    %541 = vmatpush1.msra.mxu0 0.0
    %542 = vmatprep.subr.mxu0 0.0
    %543 = vmatpush1.msra.mxu0 0.0
    %544 = vmatprep.subr.mxu0 0.0
    %545 = vmatpush1.msra.mxu0 0.0
    %546 = vmatprep.subr.mxu0 0.0
    %547 = vmatpush1.msra.mxu0 0.0
    %548 = vmatprep.subr.mxu0 0.0
    %549 = vmatpush1.msra.mxu0 0.0
    %550 = vmatprep.subr.mxu0 0.0
    %551 = vmatpush1.msra.mxu0 0.0
    %552 = vmatprep.subr.mxu0 0.0
    %553 = vmatpush1.msra.mxu0 0.0
    %554 = vmatprep.subr.mxu0 0.0
    %555 = vmatpush1.msra.mxu0 0.0
    %556 = vmatprep.subr.mxu0 0.0
    %557 = vmatpush1.msra.mxu0 0.0
    %558 = vmatprep.subr.mxu0 0.0
    %559 = vmatpush1.msra.mxu0 0.0
    %560 = vmatprep.subr.mxu0 0.0
    %561 = vmatpush1.msra.mxu0 0.0
    %562 = vmatprep.subr.mxu0 0.0
    %563 = vmatpush1.msra.mxu0 0.0
    %564 = vmatprep.subr.mxu0 0.0
    %565 = vmatpush1.msra.mxu0 0.0
    %566 = vmatprep.subr.mxu0 0.0
    %567 = vmatpush1.msra.mxu0 0.0
    %568 = vmatprep.subr.mxu0 0.0
    %569 = vmatpush1.msra.mxu0 0.0
    %570 = vmatprep.subr.mxu0 0.0
    %571 = vmatpush1.msra.mxu0 0.0
    %572 = vmatprep.subr.mxu0 0.0
    %573 = vmatpush1.msra.mxu0 0.0
    %574 = vmatprep.subr.mxu0 0.0
    %575 = vmatpush1.msra.mxu0 0.0
    %576 = vmatprep.subr.mxu0 0.0
    %577 = vmatpush1.msra.mxu0 0.0
    %578 = vmatprep.subr.mxu0 0.0
    %579 = vmatpush1.msra.mxu0 0.0
    %580 = vmatprep.subr.mxu0 0.0
    %581 = vmatpush1.msra.mxu0 0.0
    %582 = vmatprep.subr.mxu0 0.0
    %583 = vmatpush1.msra.mxu0 0.0
    %584 = vmatprep.subr.mxu0 0.0
    %585 = vmatpush1.msra.mxu0 0.0
    %586 = vmatprep.subr.mxu0 0.0
    %587 = vmatpush1.msra.mxu0 0.0
    %588 = vmatprep.subr.mxu0 0.0
    %589 = vmatpush1.msra.mxu0 0.0
    %590 = vmatprep.subr.mxu0 0.0
    %591 = vmatpush1.msra.mxu0 0.0
    %592 = vmatprep.subr.mxu0 0.0
    %593 = vmatpush1.msra.mxu0 0.0
    %594 = vmatprep.subr.mxu0 0.0
    %595 = vmatpush1.msra.mxu0 0.0
    %596 = vmatprep.mubr.f32.mxu0 0.0
    %597 = vmatmul.mubr.f32.gmra.mrb[0].mxu0 %v530
    %v598 = vpop.f32.mrb[0].mxu0
    %v599 = vadd.f32 0.0, %v598
    %v600 = vpop.f32.mrb[0].mxu0
    %601 = vdwg.mxu0
    %603 = vrot.lane.b32.xlu0 %v520, 32
    %v604 = vpop.permute.xlu0 %603
    %v605 = vsel %vm65, %v604, 0
    %607 = vmatprep.subr.mxu0 0.0
    %608 = vmatpush1.msra.mxu0 %v521
    %609 = vmatprep.subr.mxu0 0.0
    %610 = vmatpush1.msra.mxu0 %v522
    %611 = vmatprep.subr.mxu0 0.0
    %612 = vmatpush1.msra.mxu0 %v523
    %613 = vmatprep.subr.mxu0 0.0
    %614 = vmatpush1.msra.mxu0 %v524
    %615 = vmatprep.subr.mxu0 0.0
    %616 = vmatpush1.msra.mxu0 0.0
    %617 = vmatprep.subr.mxu0 0.0
    %618 = vmatpush1.msra.mxu0 0.0
    %619 = vmatprep.subr.mxu0 0.0
    %620 = vmatpush1.msra.mxu0 0.0
    %621 = vmatprep.subr.mxu0 0.0
    %622 = vmatpush1.msra.mxu0 0.0
    %623 = vmatprep.subr.mxu0 0.0
    %624 = vmatpush1.msra.mxu0 0.0
    %625 = vmatprep.subr.mxu0 0.0
    %626 = vmatpush1.msra.mxu0 0.0
    %627 = vmatprep.subr.mxu0 0.0
    %628 = vmatpush1.msra.mxu0 0.0
    %629 = vmatprep.subr.mxu0 0.0
    %630 = vmatpush1.msra.mxu0 0.0
    %631 = vmatprep.subr.mxu0 0.0
    %632 = vmatpush1.msra.mxu0 0.0
    %633 = vmatprep.subr.mxu0 0.0
    %634 = vmatpush1.msra.mxu0 0.0
    %635 = vmatprep.subr.mxu0 0.0
    %636 = vmatpush1.msra.mxu0 0.0
    %637 = vmatprep.subr.mxu0 0.0
    %638 = vmatpush1.msra.mxu0 0.0
    %639 = vmatprep.subr.mxu0 0.0
    %640 = vmatpush1.msra.mxu0 0.0
    %641 = vmatprep.subr.mxu0 0.0
    %642 = vmatpush1.msra.mxu0 0.0
    %643 = vmatprep.subr.mxu0 0.0
    %644 = vmatpush1.msra.mxu0 0.0
    %645 = vmatprep.subr.mxu0 0.0
    %646 = vmatpush1.msra.mxu0 0.0
    %647 = vmatprep.subr.mxu0 0.0
    %648 = vmatpush1.msra.mxu0 0.0
    %649 = vmatprep.subr.mxu0 0.0
    %650 = vmatpush1.msra.mxu0 0.0
    %651 = vmatprep.subr.mxu0 0.0
    %652 = vmatpush1.msra.mxu0 0.0
    %653 = vmatprep.subr.mxu0 0.0
    %654 = vmatpush1.msra.mxu0 0.0
    %655 = vmatprep.subr.mxu0 0.0
    %656 = vmatpush1.msra.mxu0 0.0
    %657 = vmatprep.subr.mxu0 0.0
    %658 = vmatpush1.msra.mxu0 0.0
    %659 = vmatprep.subr.mxu0 0.0
    %660 = vmatpush1.msra.mxu0 0.0
    %661 = vmatprep.subr.mxu0 0.0
    %662 = vmatpush1.msra.mxu0 0.0
    %663 = vmatprep.subr.mxu0 0.0
    %664 = vmatpush1.msra.mxu0 0.0
    %665 = vmatprep.subr.mxu0 0.0
    %666 = vmatpush1.msra.mxu0 0.0
    %667 = vmatprep.subr.mxu0 0.0
    %668 = vmatpush1.msra.mxu0 0.0
    %669 = vmatprep.subr.mxu0 0.0
    %670 = vmatpush1.msra.mxu0 0.0
    %671 = vmatprep.mubr.f32.mxu0 0.0
    %672 = vmatmul.mubr.f32.gmra.mrb[0].mxu0 %v605
    %v673 = vpop.f32.mrb[0].mxu0
    %v674 = vadd.f32 %v599, %v673
    %v675 = vpop.f32.mrb[0].mxu0
    %676 = vdwg.mxu0
    %v677 = vld [vmem:[%s14] sm:$0x1]
    %v679 = vlaneseq
    %v680 = vshrl.u32 %v679, 7
    %v681 = vsub.s32 0, %v680
    %v682 = vrot.slane %v677, %v681
    %v684 = vadd.f32 %v674, %v682
    %vm686 = vcmask 257024
    %687 = vst.msk [vmem:[#allocation2] sm:$0xf] %vm686, %v604
    %vm688 = vcmask 519424
    %689 = vst.msk [vmem:[#allocation2] sm:$0xf] %vm688, %v514
    %691 = vrot.lane.b32.xlu0 %v684, 64
    %v692 = vpop.permute.xlu0 %691
    %vm694 = vcmask 527872
    %695 = vst.msk [vmem:[#allocation2] sm:$0xf] %vm694, %v692
    %vm696 = vcmask 44040
    %v697 = vsel %vm696, %v684, -inf
    %698 = vmax.xlane.f32.xlu0 %v697
    %v699 = vpop.xlane.xlu0 %698
    %v700 = vsub.f32 %v684, %v699
    %v701 = vmul.f32 %v700, 1.442695
    %v702 = vpow.pop %v701
    %704 = vrot.lane.b32.xlu0 %v702, 127
    %v705 = vpop.permute.xlu0 %704
    %vm707 = vcmask 35840
    %v708 = vsel %vm707, %v705, 0.0
    %709 = vadd.xlane.f32.xlu0 %v708
    %v710 = vpop.xlane.xlu0 %709
    %v711 = vlog2.pop %v710
    %v712 = vmul.f32 %v711, 0.6931472
    %v713 = vsub.f32 %v700, %v712
    %715 = vrot.lane.b32.xlu0 %v713, 64
    %v716 = vpop.permute.xlu0 %715
    %vm718 = vcmask 568840
    %719 = vst.msk [vmem:[#allocation2] sm:$0xf] %vm718, %v716
    %vm720 = vcmask 101424
    %v721 = vsel %vm720, %v684, -inf
    %722 = vmax.xlane.f32.xlu0 %v721
    %v723 = vpop.xlane.xlu0 %722
    %v724 = vsub.f32 %v684, %v723
    %v725 = vmul.f32 %v724, 1.442695
    %v726 = vpow.pop %v725
    %728 = vrot.lane.b32.xlu0 %v726, 122
    %v729 = vpop.permute.xlu0 %728
    %vm731 = vcmask 52224
    %v732 = vsel %vm731, %v729, 0.0
    %733 = vadd.xlane.f32.xlu0 %v732
    %v734 = vpop.xlane.xlu0 %733
    %v735 = vlog2.pop %v734
    %v736 = vmul.f32 %v735, 0.6931472
    %v737 = vsub.f32 %v724, %v736
    %739 = vrot.lane.b32.xlu0 %v737, 64
    %v740 = vpop.permute.xlu0 %739
    %vm742 = vcmask 626224
    %743 = vst.msk [vmem:[#allocation2] sm:$0xf] %vm742, %v740
    %vm744 = vcmask 1044072
    %745 = vst.msk [vmem:[#allocation2] sm:$0xf] %vm744, 0.0
    // Predicated region
    $region62: #{tpu_custom_call.1} parent=1 // pred_check
      _
    $region63: #{tpu_custom_call.1} parent=1 // pred_check_branch
      %747 = sbr.rel (0) target = $region65
    $region64: #{tpu_custom_call.1} parent=1 // pred_region
      %s749 = ssub.s32 64, 64
      %750 = vsyncadd [#allocation3], %s749
      %s752 = sshll.u32 [#allocation2], 4
      %s753 = int_to_ptr.vmem [resolvable:$true] %s752
      %755 = dma.vmem_to_hbm [thread:$0]  %s753, 64, %s15, [#allocation3]
    $region65: #{tpu_custom_call.1} parent=1 // pred_fallthru
      _
    // Predicated region
    $region66: #{tpu_custom_call.1} parent=1 // pred_check
      _
    $region67: #{tpu_custom_call.1} parent=1 // pred_check_branch
      %757 = sbr.rel (0) target = $region69
    $region68: #{tpu_custom_call.1} parent=1 // pred_region
      %758 = dma.done [#allocation3], 64
    $region69: #{tpu_custom_call.1} parent=1 // pred_fallthru
      _
    %759 = vsyncpa [#allocation3], 1

</llo_original>
